<compile_context>
chip_gen: v5e
topology: v5e:2x2
jax: 0.10.0
libtpu: 0.0.40
codegen_flags: <defaults>
</compile_context>

<pallas_src>
import functools

import jax
import jax.numpy as jnp
import numpy as np
from jax import lax
from jax.experimental import pallas as pl
from jax.experimental.pallas import tpu as pltpu


def cbow_kernel(ctx_ref,    # SMEM (n_b*C*TB,) int32   flat context ids, c-major within a tile
                emb_hbm,    # HBM  (V, E)              embedding table (never fully loaded)
                w_ref,      # VMEM (TV, E)             U_transpose.weight vocab tile (PyTorch layout)
                b_ref,      # VMEM (1, TV) f32         U_transpose.bias vocab tile
                out_ref,    # VMEM (TB, V) f32         resident output block: log-probabilities
                ebar_ref,   # VMEM (TB, E) w-dtype     cached mean context embedding (MXU operand)
                m_ref,      # VMEM (TB, 1) f32         online-logsumexp running max
                l_ref,      # VMEM (TB, 1) f32         online-logsumexp running sum-exp
                rows_ref,   # VMEM (C*TB, E)           gathered embedding rows
                sem,        # DMA semaphore (all copies equal-sized; every copy is waited)
                *, n_v, tile_v):
    i = pl.program_id(0)          # batch tile
    j = pl.program_id(1)          # vocab tile
    TB, E = ebar_ref.shape
    n_rows = rows_ref.shape[0]    # C * TB
    C = n_rows // TB

    # ---- first vocab tile of this batch tile: gather rows, e_bar = mean, init logsumexp ----
    @pl.when(j == 0)
    def _init():
        m_ref[...] = jnp.full((TB, 1), -jnp.inf, dtype=jnp.float32)
        l_ref[...] = jnp.zeros((TB, 1), dtype=jnp.float32)

        base = i * n_rows

        def _start(r, carry):     # issue all row DMAs; rolled loop -> code size independent of B*C
            tok = ctx_ref[base + r]
            pltpu.make_async_copy(emb_hbm.at[pl.ds(tok, 1), :],
                                  rows_ref.at[pl.ds(r, 1), :], sem).start()
            return carry

        lax.fori_loop(0, n_rows, _start, 0)

        def _wait(r, carry):      # n_rows equal-sized waits provably cover all in-flight copies
            pltpu.make_async_copy(emb_hbm.at[pl.ds(0, 1), :],
                                  rows_ref.at[pl.ds(r, 1), :], sem).wait()
            return carry

        lax.fori_loop(0, n_rows, _wait, 0)

        # e_bar = mean over the context window: f32 accumulation, cached once in the MXU
        # operand dtype (no per-vocab-tile cast).
        acc = jnp.zeros((TB, E), dtype=jnp.float32)
        for c in range(C):        # C is a small static constant
            acc = acc + rows_ref[pl.ds(c * TB, TB), :].astype(jnp.float32)
        ebar_ref[...] = (acc * (1.0 / C)).astype(ebar_ref.dtype)

    # ---- every vocab tile: logits tile -> resident output slab + online logsumexp ----------
    logits = lax.dot_general(                     # e_bar @ W_tile^T (weight stays untransposed)
        ebar_ref[...], w_ref[...],
        dimension_numbers=(((1,), (1,)), ((), ())),
        preferred_element_type=jnp.float32) + b_ref[...]           # (TB, TV) f32

    # Store this tile's unnormalized logits into its (TB, TV) column slab of the resident
    # output.  Exactly ONE branch runs per grid step; static slices keep every store
    # lane-dense and statically aligned.  n_v is small because tile_v is sized to ~MB tiles.
    for jj in range(n_v):
        @pl.when(j == jj)
        def _store(jj=jj):
            out_ref[:, jj * tile_v:(jj + 1) * tile_v] = logits

    tile_max = jnp.max(logits, axis=-1, keepdims=True)             # (TB, 1)
    m_new = jnp.maximum(m_ref[...], tile_max)
    l_ref[...] = (l_ref[...] * jnp.exp(m_ref[...] - m_new)
                  + jnp.sum(jnp.exp(logits - m_new), axis=-1, keepdims=True))
    m_ref[...] = m_new

    # ---- last vocab tile: single vectorized normalization of the whole resident block ------
    @pl.when(j == n_v - 1)
    def _finalize():
        lse = m_ref[...] + jnp.log(l_ref[...])                      # (TB, 1)
        out_ref[...] = out_ref[...] - lse


def _pick_tile_v(V, E, weight_itemsize, target_bytes=2 << 20):
    """Largest multiple-of-128 divisor of V whose weight tile is <= ~target_bytes (~2 MB)."""
    target = max(128, min(V, target_bytes // max(1, E * weight_itemsize)))
    t = (target // 128) * 128
    while t >= 128:
        if V % t == 0:
            return t
        t -= 128
    return 128


def cbow_forward(context, emb_table, u_weight, u_bias, *, tile_v=None, tile_b=None):
    """log_softmax(mean(emb_table[context], axis=1) @ u_weight.T + u_bias) as a Pallas kernel.

    context   : (B, C) int   context-word ids
    emb_table : (V, E)       embedding table (stays in HBM; gathered row-wise)
    u_weight  : (V, E)       Linear weight, PyTorch layout (pass bf16: cast once, outside)
    u_bias    : (V,)
    returns   : (B, V) f32   log-probabilities
    """
    B, C = context.shape
    V, E = emb_table.shape
    assert u_weight.shape == (V, E) and u_bias.shape == (V,)
    assert V % 128 == 0, "vocab_size must be a multiple of 128"

    w_bytes = jnp.dtype(u_weight.dtype).itemsize
    emb_bytes = jnp.dtype(emb_table.dtype).itemsize
    if tile_v is None:
        tile_v = _pick_tile_v(V, E, w_bytes)
    # TODO(synk): mask the trailing partial vocab tile (logsumexp + store) when V % tile_v != 0.
    assert V % tile_v == 0 and tile_v % 128 == 0
    if tile_b is None:
        tile_b = B if B <= 256 else 256
    assert B % tile_b == 0, "batch must be a multiple of tile_b"
    n_v = V // tile_v
    n_b = B // tile_b

    # Flat 1-D SMEM ids, c-major inside each batch tile:
    #   ctx_flat[i*C*TB + c*TB + b] = context[i*TB + b, c]
    # so the gathered rows for window position c land contiguously in rows_ref.
    ctx_flat = (context.astype(jnp.int32)
                .reshape(n_b, tile_b, C).transpose(0, 2, 1).reshape(n_b * C * tile_b))

    kernel = functools.partial(cbow_kernel, n_v=n_v, tile_v=tile_v)

    # VMEM budget: resident out block (x2 buffers) + double-buffered weight/bias tiles +
    # gather rows + cached e_bar.  Clamped to v7x's 64 MiB physical VMEM.
    est = (2 * tile_b * V * 4 + 2 * tile_v * E * w_bytes + 2 * 8 * tile_v * 4
           + C * tile_b * E * emb_bytes + tile_b * E * w_bytes + 64 * tile_b)
    vmem_limit = int(min(64 << 20, max(32 << 20, 2 * est)))

    grid_spec = pltpu.PrefetchScalarGridSpec(
        num_scalar_prefetch=1,                    # context ids -> SMEM (cheap scalar reads)
        grid=(n_b, n_v),                          # batch tiles x vocab tiles (vocab innermost)
        in_specs=[
            pl.BlockSpec(memory_space=pl.ANY),                        # embedding table in HBM
            pl.BlockSpec((tile_v, E), lambda i, j, ctx: (j, 0)),      # weight tile (2-buffered)
            pl.BlockSpec((1, tile_v), lambda i, j, ctx: (0, j)),      # bias tile
        ],
        out_specs=pl.BlockSpec((tile_b, V), lambda i, j, ctx: (i, 0)),  # VMEM-resident block
        scratch_shapes=[
            pltpu.VMEM((tile_b, E), u_weight.dtype),       # cached e_bar (MXU operand dtype)
            pltpu.VMEM((tile_b, 1), jnp.float32),          # running max
            pltpu.VMEM((tile_b, 1), jnp.float32),          # running sum-exp
            pltpu.VMEM((C * tile_b, E), emb_table.dtype),  # gathered embedding rows
            pltpu.SemaphoreType.DMA(()),
        ],
    )

    return pl.pallas_call(
        kernel,
        out_shape=jax.ShapeDtypeStruct((B, V), jnp.float32),
        grid_spec=grid_spec,
        compiler_params=pltpu.CompilerParams(
            # Batch tiles are independent (v7x megacore splits them across its 2 TCs); the
            # vocab axis carries the online logsumexp + resident output, so it stays sequential.
            dimension_semantics=("parallel", "arbitrary"),
            vmem_limit_bytes=vmem_limit),
    )(ctx_flat, emb_table, u_weight, u_bias.astype(jnp.float32).reshape(1, V))


def cbow_reference(context, emb_table, u_weight, u_bias):
    """Pure-JAX f32 reference matching the PyTorch module semantics."""
    e_i = emb_table[context]                  # (B, C, E)  self.embeddings(context)
    e_bar = jnp.mean(e_i, axis=1)             # (B, E)
    logits = e_bar @ u_weight.T + u_bias      # (B, V)     self.U_transpose(e_bar)
    return jax.nn.log_softmax(logits, axis=-1)


if __name__ == "__main__":
    vocab_size, embedding_size = 512, 64      # small, but enough to exercise vocab tiling
    B, C = 8, 4                               # 8 context windows, context width 4

    key = jax.random.PRNGKey(0)
    k1, k2, k3, k4 = jax.random.split(key, 4)
    emb_table = jax.random.normal(k1, (vocab_size, embedding_size), jnp.float32)
    u_weight = 0.1 * jax.random.normal(k2, (vocab_size, embedding_size), jnp.float32)
    u_bias = 0.01 * jax.random.normal(k3, (vocab_size,), jnp.float32)
    context = jax.random.randint(k4, (B, C), 0, vocab_size, dtype=jnp.int32)

    # Weights are static across steps: cast the MXU-streamed projection weight to bf16 once,
    # OUTSIDE the forward (no per-call transpose, no per-call cast).
    u_weight_bf16 = u_weight.astype(jnp.bfloat16)

    ref = cbow_reference(context, emb_table, u_weight, u_bias)

    # Default tiling: tile_v = V for this small vocab (single vocab tile per batch tile).
    out = jax.block_until_ready(cbow_forward(context, emb_table, u_weight_bf16, u_bias))
    assert out.shape == (B, vocab_size)
    err = float(np.max(np.abs(np.asarray(out) - np.asarray(ref))))
    # bf16 projection weights / bf16 e_bar vs. the f32 reference -> bf16-level absolute error.
    assert np.allclose(np.asarray(out), np.asarray(ref), atol=3e-2, rtol=0.0), err

    # Multi-tile path: streams vocab tiles with the online logsumexp + resident output block.
    out2 = jax.block_until_ready(
        cbow_forward(context, emb_table, u_weight_bf16, u_bias, tile_v=128))
    err2 = float(np.max(np.abs(np.asarray(out2) - np.asarray(ref))))
    assert np.allclose(np.asarray(out2), np.asarray(ref), atol=3e-2, rtol=0.0), err2

    print("KERNEL_OK")
</pallas_src>

<mosaic_0001>
module attributes {stable_mosaic.version = 11 : i64} {
  func.func @cbow_kernel(%arg0: i32, %arg1: i32, %arg2: memref<32xi32, #tpu.memory_space<smem>>, %arg3: memref<512x64xf32, #tpu.memory_space<any>>, %arg4: memref<512x64xbf16, #tpu.memory_space<vmem>>, %arg5: memref<1x512xf32, #tpu.memory_space<vmem>>, %arg6: memref<8x512xf32, #tpu.memory_space<vmem>>, %arg7: memref<8x64xbf16, #tpu.memory_space<vmem>>, %arg8: memref<8x1xf32, #tpu.memory_space<vmem>>, %arg9: memref<8x1xf32, #tpu.memory_space<vmem>>, %arg10: memref<32x64xf32, #tpu.memory_space<vmem>>, %arg11: memref<!tpu.dma_semaphore, #tpu.memory_space<semaphore_mem>>) attributes {dimension_semantics = [#tpu.dimension_semantics<parallel>, #tpu.dimension_semantics<arbitrary>], iteration_bounds = array<i64: 1, 1>, scalar_prefetch = 1 : i64, scratch_operands = 5 : i64, tpu.core_type = #tpu.core_type<tc>, window_params = [{}, {transform_indices = @transform_1, window_bounds = array<i64: 512, 64>}, {transform_indices = @transform_2, window_bounds = array<i64: 1, 512>}, {transform_indices = @transform_3, window_bounds = array<i64: 8, 512>}]} {
    %c0_i32 = arith.constant 0 : i32
    %0 = arith.cmpi eq, %arg1, %c0_i32 : i32
    %1 = arith.extui %0 : i1 to i32
    %c0_i32_0 = arith.constant 0 : i32
    %2 = arith.cmpi ne, %1, %c0_i32_0 : i32
    scf.if %2 {
      %cst_22 = arith.constant 0xFF800000 : f32
      %32 = vector.broadcast %cst_22 : f32 to vector<8x1xf32>
      %c0_23 = arith.constant 0 : index
      %c0_24 = arith.constant 0 : index
      %33 = vector.load %arg8[%c0_23, %c0_24] : memref<8x1xf32, #tpu.memory_space<vmem>>, vector<8x1xf32>
      tpu.vector_store %arg8[%c0_23, %c0_24], %32 {strides = array<i32>} : memref<8x1xf32, #tpu.memory_space<vmem>>, vector<8x1xf32>,
      %cst_25 = arith.constant 0.000000e+00 : f32
      %34 = vector.broadcast %cst_25 : f32 to vector<8x1xf32>
      %c0_26 = arith.constant 0 : index
      %c0_27 = arith.constant 0 : index
      %35 = vector.load %arg9[%c0_26, %c0_27] : memref<8x1xf32, #tpu.memory_space<vmem>>, vector<8x1xf32>
      tpu.vector_store %arg9[%c0_26, %c0_27], %34 {strides = array<i32>} : memref<8x1xf32, #tpu.memory_space<vmem>>, vector<8x1xf32>,
      %c32_i32 = arith.constant 32 : i32
      %36 = arith.muli %arg0, %c32_i32 : i32
      %c0_i32_28 = arith.constant 0 : i32
      %c32_i32_29 = arith.constant 32 : i32
      %37 = arith.addi %c0_i32_28, %c32_i32_29 : i32
      %c1_i32 = arith.constant 1 : i32
      scf.for %arg12 = %c0_i32_28 to %37 step %c1_i32  : i32 {
        %52 = arith.addi %36, %arg12 : i32
        %53 = arith.index_cast %52 : i32 to index
        %54 = memref.load %arg2[%53] : memref<32xi32, #tpu.memory_space<smem>>
        %c0_i32_44 = arith.constant 0 : i32
        %55 = tpu.memref_slice %arg3[%54, %c0_i32_44] : memref<512x64xf32, #tpu.memory_space<any>> -> memref<1x64xf32, #tpu.memory_space<any>>
        %c0_i32_45 = arith.constant 0 : i32
        %56 = tpu.memref_slice %arg10[%arg12, %c0_i32_45] : memref<32x64xf32, #tpu.memory_space<vmem>> -> memref<1x64xf32, #tpu.memory_space<vmem>>
        tpu.enqueue_dma source(%55 : memref<1x64xf32, #tpu.memory_space<any>>) target(%56 : memref<1x64xf32, #tpu.memory_space<vmem>>) target_semaphore(%arg11 : memref<!tpu.dma_semaphore, #tpu.memory_space<semaphore_mem>>)
      }
      %c32_i32_30 = arith.constant 32 : i32
      %c0_i32_31 = arith.constant 0 : i32
      %c32_i32_32 = arith.constant 32 : i32
      %38 = arith.addi %c0_i32_31, %c32_i32_32 : i32
      %c1_i32_33 = arith.constant 1 : i32
      scf.for %arg12 = %c0_i32_31 to %38 step %c1_i32_33  : i32 {
        %c0_i32_44 = arith.constant 0 : i32
        %c0_i32_45 = arith.constant 0 : i32
        %52 = tpu.memref_slice %arg3[%c0_i32_44, %c0_i32_45] : memref<512x64xf32, #tpu.memory_space<any>> -> memref<1x64xf32, #tpu.memory_space<any>>
        %c0_i32_46 = arith.constant 0 : i32
        %53 = tpu.memref_slice %arg10[%arg12, %c0_i32_46] : memref<32x64xf32, #tpu.memory_space<vmem>> -> memref<1x64xf32, #tpu.memory_space<vmem>>
        tpu.wait_dma2 semaphore(%arg11 : memref<!tpu.dma_semaphore, #tpu.memory_space<semaphore_mem>>) src(%52 : memref<1x64xf32, #tpu.memory_space<any>>) dst(%53 : memref<1x64xf32, #tpu.memory_space<vmem>>)
      }
      %c32_i32_34 = arith.constant 32 : i32
      %cst_35 = arith.constant 0.000000e+00 : f32
      %39 = vector.broadcast %cst_35 : f32 to vector<8x64xf32>
      %c0_36 = arith.constant 0 : index
      %c0_37 = arith.constant 0 : index
      %40 = vector.load %arg10[%c0_36, %c0_37] : memref<32x64xf32, #tpu.memory_space<vmem>>, vector<8x64xf32>
      %41 = arith.addf %39, %40 : vector<8x64xf32>
      %c8 = arith.constant 8 : index
      %c0_38 = arith.constant 0 : index
      %42 = vector.load %arg10[%c8, %c0_38] : memref<32x64xf32, #tpu.memory_space<vmem>>, vector<8x64xf32>
      %43 = arith.addf %41, %42 : vector<8x64xf32>
      %c16 = arith.constant 16 : index
      %c0_39 = arith.constant 0 : index
      %44 = vector.load %arg10[%c16, %c0_39] : memref<32x64xf32, #tpu.memory_space<vmem>>, vector<8x64xf32>
      %45 = arith.addf %43, %44 : vector<8x64xf32>
      %c24 = arith.constant 24 : index
      %c0_40 = arith.constant 0 : index
      %46 = vector.load %arg10[%c24, %c0_40] : memref<32x64xf32, #tpu.memory_space<vmem>>, vector<8x64xf32>
      %47 = arith.addf %45, %46 : vector<8x64xf32>
      %cst_41 = arith.constant 2.500000e-01 : f32
      %48 = vector.broadcast %cst_41 : f32 to vector<8x64xf32>
      %49 = arith.mulf %47, %48 : vector<8x64xf32>
      %50 = arith.truncf %49 : vector<8x64xf32> to vector<8x64xbf16>
      %c0_42 = arith.constant 0 : index
      %c0_43 = arith.constant 0 : index
      %51 = vector.load %arg7[%c0_42, %c0_43] : memref<8x64xbf16, #tpu.memory_space<vmem>>, vector<8x64xbf16>
      tpu.vector_store %arg7[%c0_42, %c0_43], %50 {strides = array<i32>} : memref<8x64xbf16, #tpu.memory_space<vmem>>, vector<8x64xbf16>,
    } else {
    }
    %c0 = arith.constant 0 : index
    %c0_1 = arith.constant 0 : index
    %3 = vector.load %arg7[%c0, %c0_1] : memref<8x64xbf16, #tpu.memory_space<vmem>>, vector<8x64xbf16>
    %c0_2 = arith.constant 0 : index
    %c0_3 = arith.constant 0 : index
    %4 = vector.load %arg4[%c0_2, %c0_3] : memref<512x64xbf16, #tpu.memory_space<vmem>>, vector<512x64xbf16>
    %cst = arith.constant dense<0.000000e+00> : vector<8x512xf32>
    %5 = tpu.matmul %3, %4, %cst {dimension_numbers = #tpu.dot_dimension_numbers<[1], [1], [0], [0], [0, 0, 1, 0], [], []>} : vector<8x64xbf16>, vector<512x64xbf16>, vector<8x512xf32> -> vector<8x512xf32>
    %c0_4 = arith.constant 0 : index
    %c0_5 = arith.constant 0 : index
    %6 = vector.load %arg5[%c0_4, %c0_5] : memref<1x512xf32, #tpu.memory_space<vmem>>, vector<1x512xf32>
    %7 = vector.broadcast %6 : vector<1x512xf32> to vector<8x512xf32>
    %8 = arith.addf %5, %7 : vector<8x512xf32>
    %c0_i32_6 = arith.constant 0 : i32
    %9 = arith.cmpi eq, %arg1, %c0_i32_6 : i32
    %10 = arith.extui %9 : i1 to i32
    %c0_i32_7 = arith.constant 0 : i32
    %11 = arith.cmpi ne, %10, %c0_i32_7 : i32
    scf.if %11 {
      %c0_22 = arith.constant 0 : index
      %c0_23 = arith.constant 0 : index
      %32 = vector.load %arg6[%c0_22, %c0_23] : memref<8x512xf32, #tpu.memory_space<vmem>>, vector<8x512xf32>
      tpu.vector_store %arg6[%c0_22, %c0_23], %8 {strides = array<i32>} : memref<8x512xf32, #tpu.memory_space<vmem>>, vector<8x512xf32>,
    } else {
    }
    %cst_8 = arith.constant dense<0xFF800000> : vector<8xf32>
    %12 = vector.multi_reduction <maximumf>, %8, %cst_8 [1] : vector<8x512xf32> to vector<8xf32>
    %13 = vector.shape_cast %12 : vector<8xf32> to vector<8x1xf32>
    %c0_9 = arith.constant 0 : index
    %c0_10 = arith.constant 0 : index
    %14 = vector.load %arg8[%c0_9, %c0_10] : memref<8x1xf32, #tpu.memory_space<vmem>>, vector<8x1xf32>
    %15 = arith.maximumf %14, %13 : vector<8x1xf32>
    %c0_11 = arith.constant 0 : index
    %c0_12 = arith.constant 0 : index
    %16 = vector.load %arg9[%c0_11, %c0_12] : memref<8x1xf32, #tpu.memory_space<vmem>>, vector<8x1xf32>
    %c0_13 = arith.constant 0 : index
    %c0_14 = arith.constant 0 : index
    %17 = vector.load %arg8[%c0_13, %c0_14] : memref<8x1xf32, #tpu.memory_space<vmem>>, vector<8x1xf32>
    %18 = arith.subf %17, %15 : vector<8x1xf32>
    %19 = math.exp %18 : vector<8x1xf32>
    %20 = arith.mulf %16, %19 : vector<8x1xf32>
    %21 = vector.broadcast %15 : vector<8x1xf32> to vector<8x512xf32>
    %22 = arith.subf %8, %21 : vector<8x512xf32>
    %23 = math.exp %22 : vector<8x512xf32>
    %cst_15 = arith.constant dense<0.000000e+00> : vector<8xf32>
    %24 = vector.multi_reduction <add>, %23, %cst_15 [1] : vector<8x512xf32> to vector<8xf32>
    %25 = vector.shape_cast %24 : vector<8xf32> to vector<8x1xf32>
    %26 = arith.addf %20, %25 : vector<8x1xf32>
    %c0_16 = arith.constant 0 : index
    %c0_17 = arith.constant 0 : index
    %27 = vector.load %arg9[%c0_16, %c0_17] : memref<8x1xf32, #tpu.memory_space<vmem>>, vector<8x1xf32>
    tpu.vector_store %arg9[%c0_16, %c0_17], %26 {strides = array<i32>} : memref<8x1xf32, #tpu.memory_space<vmem>>, vector<8x1xf32>,
    %c0_18 = arith.constant 0 : index
    %c0_19 = arith.constant 0 : index
    %28 = vector.load %arg8[%c0_18, %c0_19] : memref<8x1xf32, #tpu.memory_space<vmem>>, vector<8x1xf32>
    tpu.vector_store %arg8[%c0_18, %c0_19], %15 {strides = array<i32>} : memref<8x1xf32, #tpu.memory_space<vmem>>, vector<8x1xf32>,
    %c0_i32_20 = arith.constant 0 : i32
    %29 = arith.cmpi eq, %arg1, %c0_i32_20 : i32
    %30 = arith.extui %29 : i1 to i32
    %c0_i32_21 = arith.constant 0 : i32
    %31 = arith.cmpi ne, %30, %c0_i32_21 : i32
    scf.if %31 {
      %c0_22 = arith.constant 0 : index
      %c0_23 = arith.constant 0 : index
      %32 = vector.load %arg8[%c0_22, %c0_23] : memref<8x1xf32, #tpu.memory_space<vmem>>, vector<8x1xf32>
      %c0_24 = arith.constant 0 : index
      %c0_25 = arith.constant 0 : index
      %33 = vector.load %arg9[%c0_24, %c0_25] : memref<8x1xf32, #tpu.memory_space<vmem>>, vector<8x1xf32>
      %34 = math.log %33 : vector<8x1xf32>
      %35 = arith.addf %32, %34 : vector<8x1xf32>
      %c0_26 = arith.constant 0 : index
      %c0_27 = arith.constant 0 : index
      %36 = vector.load %arg6[%c0_26, %c0_27] : memref<8x512xf32, #tpu.memory_space<vmem>>, vector<8x512xf32>
      %37 = vector.broadcast %35 : vector<8x1xf32> to vector<8x512xf32>
      %38 = arith.subf %36, %37 : vector<8x512xf32>
      %c0_28 = arith.constant 0 : index
      %c0_29 = arith.constant 0 : index
      %39 = vector.load %arg6[%c0_28, %c0_29] : memref<8x512xf32, #tpu.memory_space<vmem>>, vector<8x512xf32>
      tpu.vector_store %arg6[%c0_28, %c0_29], %38 {strides = array<i32>} : memref<8x512xf32, #tpu.memory_space<vmem>>, vector<8x512xf32>,
    } else {
    }
    return
  }
  func.func @transform_1(%arg0: i32, %arg1: i32, %arg2: memref<32xi32, #tpu.memory_space<smem>>) -> (i32, i32) {
    %c0_i32 = arith.constant 0 : i32
    %c0_i32_0 = arith.constant 0 : i32
    return %arg1, %c0_i32 : i32, i32
  }
  func.func @transform_2(%arg0: i32, %arg1: i32, %arg2: memref<32xi32, #tpu.memory_space<smem>>) -> (i32, i32) {
    %c0_i32 = arith.constant 0 : i32
    %c0_i32_0 = arith.constant 0 : i32
    return %c0_i32, %arg1 : i32, i32
  }
  func.func @transform_3(%arg0: i32, %arg1: i32, %arg2: memref<32xi32, #tpu.memory_space<smem>>) -> (i32, i32) {
    %c0_i32 = arith.constant 0 : i32
    %c0_i32_0 = arith.constant 0 : i32
    return %arg0, %c0_i32 : i32, i32
  }
}

</mosaic_0001>

<llo_original>
// kernel: tpu_custom_call.1
$region0: #{tpu_custom_call.1}
  #allocation0 [shape = 'u32[]', space=smem, size = 0x4, offset = 0x4, fixed_abs, tag = 'smem constant byte address 0x4 - core index']
  #allocation1 [shape = 'u32[72,128]{1,0:T(1,128)}', space=vmem, size = 0x9000, scoped, tag = 'internal scratch']
  #allocation2 [shape = 'bf16[8,64]{1,0:T(8,128)(2,1)}', space=vmem, size = 0x800, scoped, tag = 'scratch operand']
  #allocation3 [shape = 'f32[8,1]{1,0:T(8,128)}', space=vmem, size = 0x1000, scoped, tag = 'scratch operand']
  #allocation4 [shape = 'f32[8,1]{1,0:T(8,128)}', space=vmem, size = 0x1000, scoped, tag = 'scratch operand']
  #allocation5 [shape = 'f32[32,64]{1,0:T(8,128)}', space=vmem, size = 0x4000, scoped, tag = 'scratch operand']
  #allocation6 [shape = 's32[1]{0}', space=sflag, size = 0x4, scoped, tag = 'scratch operand']
  #allocation7 [shape = 's32[1]{0}', space=sflag, size = 0x4, scoped, tag = 'scoped memory for tpu_custom_call.1']
  #allocation8 [shape = 'u8[512]{0}', space=smem, size = 0x200, scoped, tag = 'prefetched SMEM operand 0']
  #allocation11 [shape = 's32[]', space=sflag, size = 0x4, offset = 0, fixed_abs, tag = 'sflag constant byte address 0x0 - dummy sync flag']
  %s0 = inlined_call_operand.vmem [shape: s32[32], index: 0, kind: input, shape index: {}]
  %s1 = inlined_call_operand.vmem [shape: f32[512,64], index: 1, kind: input, shape index: {}]
  %s2 = inlined_call_operand.vmem [shape: bf16[512,64], index: 2, kind: input, shape index: {}]
  %s3 = inlined_call_operand.vmem [shape: f32[1,512], index: 3, kind: input, shape index: {}]
  %s4 = inlined_call_operand.hbm [shape: f32[8,512], index: 4, kind: output, shape index: {}]
  %s5 = sld [smem:[#allocation0]]
  $region74: #{tpu_custom_call.1} parent=0
    _
  %s7 = ssub.s32 1, %s5
  %s8 = scalar_select 0, %s7, %s5
  %s10 = sshll.u32 %s0, 4
  %s11 = int_to_ptr.vmem [resolvable:$true] %s10
  %13 = dma.vmem_to_smem %s11, 16, [#allocation8], [#allocation7]
  %15 = dma.done [#allocation7], 16
  %16 = sfence
  $region1: #{tpu_custom_call.1} parent=0
    #allocation9 [shape = 'u8[16384]{0}', space=vmem, size = 0x4000, scoped, tag = 'output window, operand 0, single buffered']
    #allocation10 [shape = 's32[1]{0}', space=sflag, size = 0x4, scoped, tag = 'scoped memory for tpu_custom_call.1']
    %17 = vsyncpa [#allocation10], 0
    // Predicated region
    $region2: #{tpu_custom_call.1} parent=1 // pred_check
      _
    $region3: #{tpu_custom_call.1} parent=1 // pred_check_branch
      %19 = sbr.rel (0) target = $region5
    $region4: #{tpu_custom_call.1} parent=1 // pred_region
      _
    $region5: #{tpu_custom_call.1} parent=1 // pred_fallthru
      _
    // Predicated region
    $region6: #{tpu_custom_call.1} parent=1 // pred_check
      _
    $region7: #{tpu_custom_call.1} parent=1 // pred_check_branch
      %21 = sbr.rel (0) target = $region9
    $region8: #{tpu_custom_call.1} parent=1 // pred_region
      _
    $region9: #{tpu_custom_call.1} parent=1 // pred_fallthru
      _
    %p22 = scmp.eq.s32.totalorder 0, 0
    // Predicated region
    $region10: #{tpu_custom_call.1} parent=1 // pred_check
      %p23 = pneg %p22
    $region11: #{tpu_custom_call.1} parent=1 // pred_check_branch
      %25 = sbr.rel (%p23) target = $region13
    $region12: #{tpu_custom_call.1} parent=1 // pred_region
      %vm26 = vcmask 7168
      %27 = vst.msk [vmem:[#allocation3] sm:$0xff] %vm26, -inf
      %28 = vst.msk [vmem:[#allocation4] sm:$0xff] %vm26, 0.0
      %s29 = smul.u32 0, 32
      loop: start=0, step=1, limit=32
      $region14: #{tpu_custom_call.1} parent=12 // loop_pre_header
        _
      $region15: #{tpu_custom_call.1} parent=12 // loop_header
        %s31 = sphi 0, %s35
        %p32 = scmp.ge.s32.totalorder %s31, 32
      $region16: #{tpu_custom_call.1} parent=12 // loop_header_branch
        %34 = sbr.rel (%p32) target = $region20
      $region17: #{tpu_custom_call.1} parent=12 // loop_body
        %s36 = sadd.s32 %s29, %s31
        %s37 = sld [smem:[#allocation8 + %s36]]
        %s38 = scalar_lea.vmem %s1, %s37
        %s39 = scalar_lea.vmem [#allocation5], %s31
        // Predicated region
        $region21: #{tpu_custom_call.1} parent=17 // pred_check
          _
        $region22: #{tpu_custom_call.1} parent=17 // pred_check_branch
          %41 = sbr.rel target = $region24
        $region23: #{tpu_custom_call.1} parent=17 // pred_region
          // Predicated region
          $region36: #{tpu_custom_call.1} parent=23 // pred_check
            _
          $region37: #{tpu_custom_call.1} parent=23 // pred_check_branch
            %57 = sbr.rel (0) target = $region39
          $region38: #{tpu_custom_call.1} parent=23 // pred_region
            %s59 = ssub.s32 2, 1
            loop: start=0, step=1, limit=1
            $region40: #{tpu_custom_call.1} parent=38 // loop_pre_header
              _
            $region41: #{tpu_custom_call.1} parent=38 // loop_header
              %s61 = sphi 0, %s65
              %p62 = scmp.ge.s32.totalorder %s61, 1
              %s66 = sphi %s38, %s38
              %s67 = sphi %s39, %s39
            $region42: #{tpu_custom_call.1} parent=38 // loop_header_branch
              %64 = sbr.rel (%p62) target = $region46
            $region43: #{tpu_custom_call.1} parent=38 // loop_body
              %v68 = vld [vmem:[%s66] sm:%s59]
              %69 = vst [vmem:[%s67] sm:%s59] %v68
            $region44: #{tpu_custom_call.1} parent=38 // loop_footer
              %s65 = sadd.s32 1, %s61
            $region45: #{tpu_custom_call.1} parent=38 // loop_footer_branch
              %60 = sbr.rel target = $region41
            $region46: #{tpu_custom_call.1} parent=38 // loop_exit
              _
          $region39: #{tpu_custom_call.1} parent=23 // pred_fallthru
            _
        $region24: #{tpu_custom_call.1} parent=17 // pred_fallthru
          _
        // Predicated region
        $region25: #{tpu_custom_call.1} parent=17 // pred_check
          _
        $region26: #{tpu_custom_call.1} parent=17 // pred_check_branch
          %43 = sbr.rel (0) target = $region28
        $region27: #{tpu_custom_call.1} parent=17 // pred_region
          %s45 = ssub.s32 2, 1
          loop: start=0, step=1, limit=1
          $region29: #{tpu_custom_call.1} parent=27 // loop_pre_header
            _
          $region30: #{tpu_custom_call.1} parent=27 // loop_header
            %s47 = sphi 0, %s51
            %p48 = scmp.ge.s32.totalorder %s47, 1
            %s52 = sphi %s38, %s38
            %s53 = sphi %s39, %s39
          $region31: #{tpu_custom_call.1} parent=27 // loop_header_branch
            %50 = sbr.rel (%p48) target = $region35
          $region32: #{tpu_custom_call.1} parent=27 // loop_body
            %v54 = vld [vmem:[%s52] sm:%s45]
            %55 = vst [vmem:[%s53] sm:%s45] %v54
          $region33: #{tpu_custom_call.1} parent=27 // loop_footer
            %s51 = sadd.s32 1, %s47
          $region34: #{tpu_custom_call.1} parent=27 // loop_footer_branch
            %46 = sbr.rel target = $region30
          $region35: #{tpu_custom_call.1} parent=27 // loop_exit
            _
        $region28: #{tpu_custom_call.1} parent=17 // pred_fallthru
          _
        // Predicated region
        $region47: #{tpu_custom_call.1} parent=17 // pred_check
          _
        $region48: #{tpu_custom_call.1} parent=17 // pred_check_branch
          %72 = sbr.rel (0) target = $region50
        $region49: #{tpu_custom_call.1} parent=17 // pred_region
          %73 = vsyncadd [#allocation6], 16
        $region50: #{tpu_custom_call.1} parent=17 // pred_fallthru
          _
      $region18: #{tpu_custom_call.1} parent=12 // loop_footer
        %s35 = sadd.s32 1, %s31
      $region19: #{tpu_custom_call.1} parent=12 // loop_footer_branch
        %30 = sbr.rel target = $region15
      $region20: #{tpu_custom_call.1} parent=12 // loop_exit
        _
      loop: start=0, step=1, limit=32
      $region51: #{tpu_custom_call.1} parent=12 // loop_pre_header
        _
      $region52: #{tpu_custom_call.1} parent=12 // loop_header
        %s75 = sphi 0, %s79
        %p76 = scmp.ge.s32.totalorder %s75, 32
      $region53: #{tpu_custom_call.1} parent=12 // loop_header_branch
        %78 = sbr.rel (%p76) target = $region57
      $region54: #{tpu_custom_call.1} parent=12 // loop_body
        %s80 = smul.u32 1, 1
        %s81 = sshll.u32 %s80, 4
        %82 = dma.done [#allocation6], %s81
      $region55: #{tpu_custom_call.1} parent=12 // loop_footer
        %s79 = sadd.s32 1, %s75
      $region56: #{tpu_custom_call.1} parent=12 // loop_footer_branch
        %74 = sbr.rel target = $region52
      $region57: #{tpu_custom_call.1} parent=12 // loop_exit
        _
      %v83 = vld [vmem:[#allocation5] sm:$0xff]
      %v84 = vadd.f32 %v83, 0.0
      %v85 = vld [vmem:[#allocation5 + $0x8] sm:$0xff]
      %v86 = vadd.f32 %v84, %v85
      %v87 = vld [vmem:[#allocation5 + $0x10] sm:$0xff]
      %v88 = vadd.f32 %v86, %v87
      %v89 = vld [vmem:[#allocation5 + $0x18] sm:$0xff]
      %v90 = vadd.f32 %v88, %v89
      %v91 = vmul.f32 %v90, 0.25
      %v92 = vpack.c.bf16 %v91, %v91
      %vm93 = vcmask 519168
      %94 = vst.msk [vmem:[#allocation2] sm:$0xf] %vm93, %v92
    $region13: #{tpu_custom_call.1} parent=1 // pred_fallthru
      _
    %v95 = vld [vmem:[#allocation2] sm:$0xf]
    %v96 = vld [vmem:[%s2] sm:$0xf]
    %v97 = vld [vmem:[%s2 + $0x4] sm:$0xf]
    %v98 = vld [vmem:[%s2 + $0x8] sm:$0xf]
    %v99 = vld [vmem:[%s2 + $0xc] sm:$0xf]
    %v100 = vld [vmem:[%s2 + $0x10] sm:$0xf]
    %v101 = vld [vmem:[%s2 + $0x14] sm:$0xf]
    %v102 = vld [vmem:[%s2 + $0x18] sm:$0xf]
    %v103 = vld [vmem:[%s2 + $0x1c] sm:$0xf]
    %v104 = vld [vmem:[%s2 + $0x20] sm:$0xf]
    %v105 = vld [vmem:[%s2 + $0x24] sm:$0xf]
    %v106 = vld [vmem:[%s2 + $0x28] sm:$0xf]
    %v107 = vld [vmem:[%s2 + $0x2c] sm:$0xf]
    %v108 = vld [vmem:[%s2 + $0x30] sm:$0xf]
    %v109 = vld [vmem:[%s2 + $0x34] sm:$0xf]
    %v110 = vld [vmem:[%s2 + $0x38] sm:$0xf]
    %v111 = vld [vmem:[%s2 + $0x3c] sm:$0xf]
    %v112 = vld [vmem:[%s2 + $0x40] sm:$0xf]
    %v113 = vld [vmem:[%s2 + $0x44] sm:$0xf]
    %v114 = vld [vmem:[%s2 + $0x48] sm:$0xf]
    %v115 = vld [vmem:[%s2 + $0x4c] sm:$0xf]
    %v116 = vld [vmem:[%s2 + $0x50] sm:$0xf]
    %v117 = vld [vmem:[%s2 + $0x54] sm:$0xf]
    %v118 = vld [vmem:[%s2 + $0x58] sm:$0xf]
    %v119 = vld [vmem:[%s2 + $0x5c] sm:$0xf]
    %v120 = vld [vmem:[%s2 + $0x60] sm:$0xf]
    %v121 = vld [vmem:[%s2 + $0x64] sm:$0xf]
    %v122 = vld [vmem:[%s2 + $0x68] sm:$0xf]
    %v123 = vld [vmem:[%s2 + $0x6c] sm:$0xf]
    %v124 = vld [vmem:[%s2 + $0x70] sm:$0xf]
    %v125 = vld [vmem:[%s2 + $0x74] sm:$0xf]
    %v126 = vld [vmem:[%s2 + $0x78] sm:$0xf]
    %v127 = vld [vmem:[%s2 + $0x7c] sm:$0xf]
    %v128 = vld [vmem:[%s2 + $0x80] sm:$0xf]
    %v129 = vld [vmem:[%s2 + $0x84] sm:$0xf]
    %v130 = vld [vmem:[%s2 + $0x88] sm:$0xf]
    %v131 = vld [vmem:[%s2 + $0x8c] sm:$0xf]
    %v132 = vld [vmem:[%s2 + $0x90] sm:$0xf]
    %v133 = vld [vmem:[%s2 + $0x94] sm:$0xf]
    %v134 = vld [vmem:[%s2 + $0x98] sm:$0xf]
    %v135 = vld [vmem:[%s2 + $0x9c] sm:$0xf]
    %v136 = vld [vmem:[%s2 + $0xa0] sm:$0xf]
    %v137 = vld [vmem:[%s2 + $0xa4] sm:$0xf]
    %v138 = vld [vmem:[%s2 + $0xa8] sm:$0xf]
    %v139 = vld [vmem:[%s2 + $0xac] sm:$0xf]
    %v140 = vld [vmem:[%s2 + $0xb0] sm:$0xf]
    %v141 = vld [vmem:[%s2 + $0xb4] sm:$0xf]
    %v142 = vld [vmem:[%s2 + $0xb8] sm:$0xf]
    %v143 = vld [vmem:[%s2 + $0xbc] sm:$0xf]
    %v144 = vld [vmem:[%s2 + $0xc0] sm:$0xf]
    %v145 = vld [vmem:[%s2 + $0xc4] sm:$0xf]
    %v146 = vld [vmem:[%s2 + $0xc8] sm:$0xf]
    %v147 = vld [vmem:[%s2 + $0xcc] sm:$0xf]
    %v148 = vld [vmem:[%s2 + $0xd0] sm:$0xf]
    %v149 = vld [vmem:[%s2 + $0xd4] sm:$0xf]
    %v150 = vld [vmem:[%s2 + $0xd8] sm:$0xf]
    %v151 = vld [vmem:[%s2 + $0xdc] sm:$0xf]
    %v152 = vld [vmem:[%s2 + $0xe0] sm:$0xf]
    %v153 = vld [vmem:[%s2 + $0xe4] sm:$0xf]
    %v154 = vld [vmem:[%s2 + $0xe8] sm:$0xf]
    %v155 = vld [vmem:[%s2 + $0xec] sm:$0xf]
    %v156 = vld [vmem:[%s2 + $0xf0] sm:$0xf]
    %v157 = vld [vmem:[%s2 + $0xf4] sm:$0xf]
    %v158 = vld [vmem:[%s2 + $0xf8] sm:$0xf]
    %v159 = vld [vmem:[%s2 + $0xfc] sm:$0xf]
    %v160 = vld [vmem:[%s3] sm:$0xf]
    %v162 = vperm.slane %v160, 0
    %v163 = vperm.slane %v160, 1
    %v164 = vperm.slane %v160, 2
    %v165 = vperm.slane %v160, 3
    %v234 = vunpack.c.l.b16 %v96
    %v235 = vunpack.c.l.b16 %v97
    %v236 = vunpack.c.l.b16 %v98
    %v237 = vunpack.c.l.b16 %v99
    %v238 = vunpack.c.l.b16 %v100
    %v239 = vunpack.c.l.b16 %v101
    %v240 = vunpack.c.l.b16 %v102
    %v241 = vunpack.c.l.b16 %v103
    %v242 = vunpack.c.l.b16 %v104
    %v243 = vunpack.c.l.b16 %v105
    %v244 = vunpack.c.l.b16 %v106
    %v245 = vunpack.c.l.b16 %v107
    %v246 = vunpack.c.l.b16 %v108
    %v247 = vunpack.c.l.b16 %v109
    %v248 = vunpack.c.l.b16 %v110
    %v249 = vunpack.c.l.b16 %v111
    %v250 = vunpack.c.l.b16 %v112
    %v251 = vunpack.c.l.b16 %v113
    %v252 = vunpack.c.l.b16 %v114
    %v253 = vunpack.c.l.b16 %v115
    %v254 = vunpack.c.l.b16 %v116
    %v255 = vunpack.c.l.b16 %v117
    %v256 = vunpack.c.l.b16 %v118
    %v257 = vunpack.c.l.b16 %v119
    %v258 = vunpack.c.l.b16 %v120
    %v259 = vunpack.c.l.b16 %v121
    %v260 = vunpack.c.l.b16 %v122
    %v261 = vunpack.c.l.b16 %v123
    %v262 = vunpack.c.l.b16 %v124
    %v263 = vunpack.c.l.b16 %v125
    %v264 = vunpack.c.l.b16 %v126
    %v265 = vunpack.c.l.b16 %v127
    %v266 = vunpack.c.l.b16 %v128
    %v267 = vunpack.c.l.b16 %v129
    %v268 = vunpack.c.l.b16 %v130
    %v269 = vunpack.c.l.b16 %v131
    %v270 = vunpack.c.l.b16 %v132
    %v271 = vunpack.c.l.b16 %v133
    %v272 = vunpack.c.l.b16 %v134
    %v273 = vunpack.c.l.b16 %v135
    %v274 = vunpack.c.l.b16 %v136
    %v275 = vunpack.c.l.b16 %v137
    %v276 = vunpack.c.l.b16 %v138
    %v277 = vunpack.c.l.b16 %v139
    %v278 = vunpack.c.l.b16 %v140
    %v279 = vunpack.c.l.b16 %v141
    %v280 = vunpack.c.l.b16 %v142
    %v281 = vunpack.c.l.b16 %v143
    %v282 = vunpack.c.l.b16 %v144
    %v283 = vunpack.c.l.b16 %v145
    %v284 = vunpack.c.l.b16 %v146
    %v285 = vunpack.c.l.b16 %v147
    %v286 = vunpack.c.l.b16 %v148
    %v287 = vunpack.c.l.b16 %v149
    %v288 = vunpack.c.l.b16 %v150
    %v289 = vunpack.c.l.b16 %v151
    %v290 = vunpack.c.l.b16 %v152
    %v291 = vunpack.c.l.b16 %v153
    %v292 = vunpack.c.l.b16 %v154
    %v293 = vunpack.c.l.b16 %v155
    %v294 = vunpack.c.l.b16 %v156
    %v295 = vunpack.c.l.b16 %v157
    %v296 = vunpack.c.l.b16 %v158
    %v297 = vunpack.c.l.b16 %v159
    %v298 = vpack.c.b16 %v235, %v234
    %v299 = vpack.c.b16 %v237, %v236
    %v300 = vpack.c.b16 %v239, %v238
    %v301 = vpack.c.b16 %v241, %v240
    %v302 = vpack.c.b16 %v243, %v242
    %v303 = vpack.c.b16 %v245, %v244
    %v304 = vpack.c.b16 %v247, %v246
    %v305 = vpack.c.b16 %v249, %v248
    %v306 = vpack.c.b16 %v251, %v250
    %v307 = vpack.c.b16 %v253, %v252
    %v308 = vpack.c.b16 %v255, %v254
    %v309 = vpack.c.b16 %v257, %v256
    %v310 = vpack.c.b16 %v259, %v258
    %v311 = vpack.c.b16 %v261, %v260
    %v312 = vpack.c.b16 %v263, %v262
    %v313 = vpack.c.b16 %v265, %v264
    %v314 = vpack.c.b16 %v267, %v266
    %v315 = vpack.c.b16 %v269, %v268
    %v316 = vpack.c.b16 %v271, %v270
    %v317 = vpack.c.b16 %v273, %v272
    %v318 = vpack.c.b16 %v275, %v274
    %v319 = vpack.c.b16 %v277, %v276
    %v320 = vpack.c.b16 %v279, %v278
    %v321 = vpack.c.b16 %v281, %v280
    %v322 = vpack.c.b16 %v283, %v282
    %v323 = vpack.c.b16 %v285, %v284
    %v324 = vpack.c.b16 %v287, %v286
    %v325 = vpack.c.b16 %v289, %v288
    %v326 = vpack.c.b16 %v291, %v290
    %v327 = vpack.c.b16 %v293, %v292
    %v328 = vpack.c.b16 %v295, %v294
    %v329 = vpack.c.b16 %v297, %v296
    %vm330 = vcmask 523264
    %v332 = vsel %vm330, %v95, 0
    %v335 = vsel %vm330, %v298, 0
    %v338 = vsel %vm330, %v299, 0
    %v341 = vsel %vm330, %v300, 0
    %v344 = vsel %vm330, %v301, 0
    %v347 = vsel %vm330, %v302, 0
    %v350 = vsel %vm330, %v303, 0
    %v353 = vsel %vm330, %v304, 0
    %v356 = vsel %vm330, %v305, 0
    %v359 = vsel %vm330, %v306, 0
    %v362 = vsel %vm330, %v307, 0
    %v365 = vsel %vm330, %v308, 0
    %v368 = vsel %vm330, %v309, 0
    %v371 = vsel %vm330, %v310, 0
    %v374 = vsel %vm330, %v311, 0
    %v377 = vsel %vm330, %v312, 0
    %v380 = vsel %vm330, %v313, 0
    %v383 = vsel %vm330, %v314, 0
    %v386 = vsel %vm330, %v315, 0
    %v389 = vsel %vm330, %v316, 0
    %v392 = vsel %vm330, %v317, 0
    %v395 = vsel %vm330, %v318, 0
    %v398 = vsel %vm330, %v319, 0
    %v401 = vsel %vm330, %v320, 0
    %v404 = vsel %vm330, %v321, 0
    %v407 = vsel %vm330, %v322, 0
    %v410 = vsel %vm330, %v323, 0
    %v413 = vsel %vm330, %v324, 0
    %v416 = vsel %vm330, %v325, 0
    %v419 = vsel %vm330, %v326, 0
    %v422 = vsel %vm330, %v327, 0
    %v425 = vsel %vm330, %v328, 0
    %v428 = vsel %vm330, %v329, 0
    %430 = vmatpush.bf16.xpose.msra.mxu0 %v356
    %431 = vmatpush.bf16.xpose.msra.mxu0 %v353
    %432 = vmatpush.bf16.xpose.msra.mxu0 %v350
    %433 = vmatpush.bf16.xpose.msra.mxu0 %v347
    %434 = vmatpush.bf16.xpose.msra.mxu0 %v344
    %435 = vmatpush.bf16.xpose.msra.mxu0 %v341
    %436 = vmatpush.bf16.xpose.msra.mxu0 %v338
    %437 = vmatpush.bf16.xpose.msra.mxu0 %v335
    %438 = vmatmul.bf16.gmra.mxu0 %v332
    %v439 = vpop.f32.mrf.mxu0
    %v440 = vadd.f32 %v162, %v439
    %v441 = vpop.f32.mrf.mxu0
    %442 = vdwg.mxu0
    %443 = vmatpush.bf16.xpose.msra.mxu0 %v380
    %444 = vmatpush.bf16.xpose.msra.mxu0 %v377
    %445 = vmatpush.bf16.xpose.msra.mxu0 %v374
    %446 = vmatpush.bf16.xpose.msra.mxu0 %v371
    %447 = vmatpush.bf16.xpose.msra.mxu0 %v368
    %448 = vmatpush.bf16.xpose.msra.mxu0 %v365
    %449 = vmatpush.bf16.xpose.msra.mxu0 %v362
    %450 = vmatpush.bf16.xpose.msra.mxu0 %v359
    %451 = vmatmul.bf16.gmra.mxu0 %v332
    %v452 = vpop.f32.mrf.mxu0
    %v453 = vadd.f32 %v163, %v452
    %v454 = vpop.f32.mrf.mxu0
    %455 = vdwg.mxu0
    %456 = vmatpush.bf16.xpose.msra.mxu0 %v404
    %457 = vmatpush.bf16.xpose.msra.mxu0 %v401
    %458 = vmatpush.bf16.xpose.msra.mxu0 %v398
    %459 = vmatpush.bf16.xpose.msra.mxu0 %v395
    %460 = vmatpush.bf16.xpose.msra.mxu0 %v392
    %461 = vmatpush.bf16.xpose.msra.mxu0 %v389
    %462 = vmatpush.bf16.xpose.msra.mxu0 %v386
    %463 = vmatpush.bf16.xpose.msra.mxu0 %v383
    %464 = vmatmul.bf16.gmra.mxu0 %v332
    %v465 = vpop.f32.mrf.mxu0
    %v466 = vadd.f32 %v164, %v465
    %v467 = vpop.f32.mrf.mxu0
    %468 = vdwg.mxu0
    %469 = vmatpush.bf16.xpose.msra.mxu0 %v428
    %470 = vmatpush.bf16.xpose.msra.mxu0 %v425
    %471 = vmatpush.bf16.xpose.msra.mxu0 %v422
    %472 = vmatpush.bf16.xpose.msra.mxu0 %v419
    %473 = vmatpush.bf16.xpose.msra.mxu0 %v416
    %474 = vmatpush.bf16.xpose.msra.mxu0 %v413
    %475 = vmatpush.bf16.xpose.msra.mxu0 %v410
    %476 = vmatpush.bf16.xpose.msra.mxu0 %v407
    %477 = vmatmul.bf16.gmra.mxu0 %v332
    %v478 = vpop.f32.mrf.mxu0
    %v479 = vadd.f32 %v165, %v478
    %v480 = vpop.f32.mrf.mxu0
    %481 = vdwg.mxu0
    // Predicated region
    $region58: #{tpu_custom_call.1} parent=1 // pred_check
      %p482 = pneg %p22
    $region59: #{tpu_custom_call.1} parent=1 // pred_check_branch
      %484 = sbr.rel (%p482) target = $region61
    $region60: #{tpu_custom_call.1} parent=1 // pred_region
      %485 = vst [vmem:[#allocation9] sm:$0xff] %v440
      %486 = vst [vmem:[#allocation9 + $0x8] sm:$0xff] %v453
      %487 = vst [vmem:[#allocation9 + $0x10] sm:$0xff] %v466
      %488 = vst [vmem:[#allocation9 + $0x18] sm:$0xff] %v479
    $region61: #{tpu_custom_call.1} parent=1 // pred_fallthru
      _
    %v489 = vmax.f32 %v440, %v453
    %v490 = vmax.f32 %v466, %v479
    %v491 = vmax.f32 %v489, %v490
    %492 = vmax.xlane.f32.xlu0 %v491
    %v493 = vpop.xlane.xlu0 %492
    %v494 = vld [vmem:[#allocation3] sm:$0xff]
    %v495 = vmax.f32 %v494, %v493
    %v496 = vld [vmem:[#allocation4] sm:$0xff]
    %v497 = vsub.f32 %v494, %v495
    %v498 = vmul.f32 %v497, 1.442695
    %v499 = vpow.pop %v498
    %v500 = vmul.f32 %v496, %v499
    %502 = vset.pattern.permute.xlu0 0
    %503 = vperm.xlu0 %502, %v495
    %v504 = vpop.permute.xlu0 %503
    %v506 = vsub.f32 %v440, %v504
    %v507 = vsub.f32 %v453, %v504
    %v508 = vsub.f32 %v466, %v504
    %v509 = vsub.f32 %v479, %v504
    %v510 = vmul.f32 %v506, 1.442695
    %v511 = vpow.pop %v510
    %v512 = vmul.f32 %v507, 1.442695
    %v513 = vpow.pop %v512
    %v514 = vmul.f32 %v508, 1.442695
    %v515 = vpow.pop %v514
    %v516 = vmul.f32 %v509, 1.442695
    %v517 = vpow.pop %v516
    %v518 = vadd.f32 %v511, %v513
    %v519 = vadd.f32 %v518, %v515
    %v520 = vadd.f32 %v519, %v517
    %521 = vadd.xlane.f32.xlu0 %v520
    %v522 = vpop.xlane.xlu0 %521
    %v523 = vadd.f32 %v500, %v522
    %vm524 = vcmask 7168
    %525 = vst.msk [vmem:[#allocation4] sm:$0xff] %vm524, %v523
    %526 = vst.msk [vmem:[#allocation3] sm:$0xff] %vm524, %v495
    // Predicated region
    $region62: #{tpu_custom_call.1} parent=1 // pred_check
      %p527 = pneg %p22
    $region63: #{tpu_custom_call.1} parent=1 // pred_check_branch
      %529 = sbr.rel (%p527) target = $region65
    $region64: #{tpu_custom_call.1} parent=1 // pred_region
      %v530 = vld [vmem:[#allocation3] sm:$0xff]
      %v531 = vld [vmem:[#allocation4] sm:$0xff]
      %v532 = vlog2.pop %v531
      %v533 = vmul.f32 %v532, 0.6931472
      %v534 = vadd.f32 %v530, %v533
      %v535 = vld [vmem:[#allocation9] sm:$0xff]
      %v536 = vld [vmem:[#allocation9 + $0x8] sm:$0xff]
      %v537 = vld [vmem:[#allocation9 + $0x10] sm:$0xff]
      %v538 = vld [vmem:[#allocation9 + $0x18] sm:$0xff]
      %540 = vset.pattern.permute.xlu0 0
      %541 = vperm.xlu0 %540, %v534
      %v542 = vpop.permute.xlu0 %541
      %v544 = vsub.f32 %v535, %v542
      %v545 = vsub.f32 %v536, %v542
      %v546 = vsub.f32 %v537, %v542
      %v547 = vsub.f32 %v538, %v542
      %548 = vst [vmem:[#allocation9] sm:$0xff] %v544
      %549 = vst [vmem:[#allocation9 + $0x8] sm:$0xff] %v545
      %550 = vst [vmem:[#allocation9 + $0x10] sm:$0xff] %v546
      %551 = vst [vmem:[#allocation9 + $0x18] sm:$0xff] %v547
    $region65: #{tpu_custom_call.1} parent=1 // pred_fallthru
      _
    // Predicated region
    $region66: #{tpu_custom_call.1} parent=1 // pred_check
      _
    $region67: #{tpu_custom_call.1} parent=1 // pred_check_branch
      %553 = sbr.rel (0) target = $region69
    $region68: #{tpu_custom_call.1} parent=1 // pred_region
      %555 = vsyncadd [#allocation10], 0
      %s557 = sshll.u32 [#allocation9], 4
      %s558 = int_to_ptr.vmem [resolvable:$true] %s557
      %s559 = sshll.u32 %s4, 4
      %s560 = int_to_ptr.hbm [resolvable:$true] %s559
      %562 = dma.vmem_to_hbm [thread:$0]  %s558, 512, %s560, [#allocation10]
    $region69: #{tpu_custom_call.1} parent=1 // pred_fallthru
      _
    // Predicated region
    $region70: #{tpu_custom_call.1} parent=1 // pred_check
      _
    $region71: #{tpu_custom_call.1} parent=1 // pred_check_branch
      %564 = sbr.rel (0) target = $region73
    $region72: #{tpu_custom_call.1} parent=1 // pred_region
      %566 = dma.done [#allocation10], 512
    $region73: #{tpu_custom_call.1} parent=1 // pred_fallthru
      _
    %567 = vsyncpa [#allocation10], 1
  %568 = vsyncmov [#allocation6]
  %s569 = vpop.sfrf %568
  %p570 = scmp.eq.s32.totalorder %s569, 0
  %p571 = pneg %p570
  %573 = shalt.err (%p571)

</llo_original>
